<compile_context>
chip_gen: v5e
topology: v5e:2x2
jax: 0.10.0
libtpu: 0.0.40
codegen_flags: <defaults>
</compile_context>

<pallas_src>
import math

import jax
import jax.numpy as jnp
from jax import lax
from jax.experimental import pallas as pl
from jax.experimental.pallas import tpu as pltpu

EMBED_SIZE = 32      # divisible by the hardcoded 16 groups
KERNEL_SIZE = 4      # even kernel (as in wav2vec2) -> conv length T+1, [:-1] -> T
CONV_GROUPS = 16     # nn.Conv1d(..., groups=16) — the ctor `groups` arg is ignored


def _erf(x):
    # Abramowitz & Stegun 7.1.26 polynomial erf (max abs err ~1.5e-7);
    # mul/add/exp only on the VPU/EUP; the reciprocal rides the EUP slot
    # (approx vrcp + one Newton step -> ~f32 accuracy).
    a1, a2, a3, a4, a5 = (0.254829592, -0.284496736, 1.421413741,
                          -1.453152027, 1.061405429)
    p = 0.3275911
    s = jnp.where(x >= 0.0, 1.0, -1.0)
    ax = jnp.abs(x)
    d = 1.0 + p * ax
    t = pl.reciprocal(d, approx=True)
    t = t * (2.0 - d * t)                     # one Newton step
    poly = ((((a5 * t + a4) * t + a3) * t + a2) * t + a1) * t
    return s * (1.0 - poly * jnp.exp(-ax * ax))


def _gelu_exact(x):
    # matches torch.nn.GELU() (approximate='none'): 0.5*x*(1+erf(x/sqrt(2)))
    return 0.5 * x * (1.0 + _erf(x * (1.0 / math.sqrt(2.0))))


def conv_pos_emb_kernel(xcol_ref, w_ref, b_ref, o_ref):
    # xcol_ref: (B*T_out, K*E)  im2col slab (contraction dim = K*E = 128)
    # w_ref:    (K*E, E)        block-diagonal dense grouped-conv weight
    # b_ref:    (1, E)          conv bias
    # o_ref:    (B*T_out, E)    GELU(conv(x))[:, :-1, :] flattened over (B, T)
    acc = jnp.dot(xcol_ref[...], w_ref[...],
                  preferred_element_type=jnp.float32)       # single MXU push
    acc = acc + b_ref[...]                                   # (1, E) broadcast
    o_ref[...] = _gelu_exact(acc).astype(o_ref.dtype)


def conv_positional_embedding(x, weight, bias):
    """x: (B, T, E) f32. weight: (E, E//16, K) grouped Conv1d weight. bias: (E,)."""
    B, T, E = x.shape
    K = weight.shape[-1]
    P = K // 2
    cpg = E // CONV_GROUPS
    T_pad = T + 2 * P
    T_conv = T_pad - K + 1
    T_out = T_conv - 1                       # module applies x[:, :-1, :]
    M = B * T_out

    # ---- glue (layout plumbing in plain JAX) --------------------------------
    # zero-pad time axis (conv padding) and build the im2col slab:
    # xcol[b*T_out + t, k*E + e] = x_pad[b, t + k, e]
    x_pad = jnp.pad(x, ((0, 0), (P, P), (0, 0))).astype(jnp.float32)
    cols = jnp.stack([x_pad[:, k:k + T_out, :] for k in range(K)], axis=2)
    xcol = cols.reshape(M, K * E)

    # expand grouped weight -> block-diagonal dense (K, E_in, E_out) -> (K*E, E)
    i_idx = jnp.arange(E)[:, None]
    o_idx = jnp.arange(E)[None, :]
    same_group = (i_idx // cpg) == (o_idx // cpg)                       # (E_in, E_out)
    w_kio = jnp.transpose(weight, (2, 1, 0))[:, jnp.arange(E) % cpg, :]  # (K, E, E)
    w_dense = jnp.where(same_group[None, :, :], w_kio, 0.0).astype(jnp.float32)
    w_flat = w_dense.reshape(K * E, E)
    bias2d = bias.reshape(1, E).astype(jnp.float32)
    # -------------------------------------------------------------------------

    out = pl.pallas_call(
        conv_pos_emb_kernel,
        out_shape=jax.ShapeDtypeStruct((M, E), jnp.float32),
        grid_spec=pltpu.PrefetchScalarGridSpec(
            num_scalar_prefetch=0,
            grid=(1,),                                   # single grid step
            in_specs=[
                pl.BlockSpec((M, K * E), lambda i: (0, 0)),
                pl.BlockSpec((K * E, E), lambda i: (0, 0)),
                pl.BlockSpec((1, E), lambda i: (0, 0)),
            ],
            out_specs=pl.BlockSpec((M, E), lambda i: (0, 0)),
        ),
        compiler_params=pltpu.CompilerParams(
            dimension_semantics=("arbitrary",)),
    )(xcol, w_flat, bias2d)

    return out.reshape(B, T_out, E)


def reference(x, weight, bias):
    """Plain-JAX reference mirroring the PyTorch forward exactly."""
    P = KERNEL_SIZE // 2
    y = lax.conv_general_dilated(
        jnp.transpose(x, (0, 2, 1)), weight,
        window_strides=(1,), padding=[(P, P)],
        dimension_numbers=("NCH", "OIH", "NCH"),
        feature_group_count=CONV_GROUPS)
    y = y + bias[None, :, None]
    y = jnp.transpose(y, (0, 2, 1))[:, :-1, :]
    return 0.5 * y * (1.0 + jax.scipy.special.erf(y / math.sqrt(2.0)))


if __name__ == "__main__":
    key = jax.random.PRNGKey(0)
    kx, kw, kb = jax.random.split(key, 3)

    B, T, E, K = 2, 8, EMBED_SIZE, KERNEL_SIZE
    x = jax.random.normal(kx, (B, T, E), jnp.float32)
    # deterministic synthetic parameters (shapes of nn.Conv1d(E, E, K, groups=16))
    weight = 0.1 * jax.random.normal(kw, (E, E // CONV_GROUPS, K), jnp.float32)
    bias = 0.1 * jax.random.normal(kb, (E,), jnp.float32)

    out = conv_positional_embedding(x, weight, bias)
    out = jax.block_until_ready(out)

    ref = reference(x, weight, bias)
    assert out.shape == ref.shape == (B, T, E), (out.shape, ref.shape)
    assert jnp.allclose(out, ref, rtol=1e-4, atol=1e-4), \
        float(jnp.max(jnp.abs(out - ref)))
    print("KERNEL_OK")
</pallas_src>

<mosaic_0001>
module attributes {stable_mosaic.version = 11 : i64} {
  func.func @conv_pos_emb_kernel(%arg0: i32, %arg1: memref<16x128xf32, #tpu.memory_space<vmem>>, %arg2: memref<128x32xf32, #tpu.memory_space<vmem>>, %arg3: memref<1x32xf32, #tpu.memory_space<vmem>>, %arg4: memref<16x32xf32, #tpu.memory_space<vmem>>) attributes {dimension_semantics = [#tpu.dimension_semantics<arbitrary>], iteration_bounds = array<i64: 1>, scalar_prefetch = 0 : i64, scratch_operands = 0 : i64, tpu.core_type = #tpu.core_type<tc>, window_params = [{pipeline_mode = #tpu.pipeline_mode<synchronous>, transform_indices = @transform_0, window_bounds = array<i64: 16, 128>}, {pipeline_mode = #tpu.pipeline_mode<synchronous>, transform_indices = @transform_1, window_bounds = array<i64: 128, 32>}, {pipeline_mode = #tpu.pipeline_mode<synchronous>, transform_indices = @transform_2, window_bounds = array<i64: 1, 32>}, {pipeline_mode = #tpu.pipeline_mode<synchronous>, transform_indices = @transform_3, window_bounds = array<i64: 16, 32>}]} {
    %c0 = arith.constant 0 : index
    %c0_0 = arith.constant 0 : index
    %0 = vector.load %arg1[%c0, %c0_0] : memref<16x128xf32, #tpu.memory_space<vmem>>, vector<16x128xf32>
    %c0_1 = arith.constant 0 : index
    %c0_2 = arith.constant 0 : index
    %1 = vector.load %arg2[%c0_1, %c0_2] : memref<128x32xf32, #tpu.memory_space<vmem>>, vector<128x32xf32>
    %cst = arith.constant dense<0.000000e+00> : vector<16x32xf32>
    %2 = tpu.matmul %0, %1, %cst {dimension_numbers = #tpu.dot_dimension_numbers<[1], [0], [0], [1], [0, 0, 1, 1], [], []>} : vector<16x128xf32>, vector<128x32xf32>, vector<16x32xf32> -> vector<16x32xf32>
    %c0_3 = arith.constant 0 : index
    %c0_4 = arith.constant 0 : index
    %3 = vector.load %arg3[%c0_3, %c0_4] : memref<1x32xf32, #tpu.memory_space<vmem>>, vector<1x32xf32>
    %4 = vector.broadcast %3 : vector<1x32xf32> to vector<16x32xf32>
    %5 = arith.addf %2, %4 : vector<16x32xf32>
    %cst_5 = arith.constant 5.000000e-01 : f32
    %6 = vector.broadcast %cst_5 : f32 to vector<16x32xf32>
    %7 = arith.mulf %6, %5 : vector<16x32xf32>
    %cst_6 = arith.constant 0.707106769 : f32
    %8 = vector.broadcast %cst_6 : f32 to vector<16x32xf32>
    %9 = arith.mulf %5, %8 : vector<16x32xf32>
    %cst_7 = arith.constant 0.000000e+00 : f32
    %10 = vector.broadcast %cst_7 : f32 to vector<16x32xf32>
    %11 = arith.cmpf oge, %9, %10 : vector<16x32xf32>
    %cst_8 = arith.constant 1.000000e+00 : f32
    %cst_9 = arith.constant -1.000000e+00 : f32
    %12 = vector.broadcast %cst_8 : f32 to vector<16x32xf32>
    %13 = vector.broadcast %cst_9 : f32 to vector<16x32xf32>
    %14 = arith.select %11, %12, %13 : vector<16x32xi1>, vector<16x32xf32>
    %15 = math.absf %9 : vector<16x32xf32>
    %cst_10 = arith.constant 0.327591091 : f32
    %16 = vector.broadcast %cst_10 : f32 to vector<16x32xf32>
    %17 = arith.mulf %16, %15 : vector<16x32xf32>
    %cst_11 = arith.constant 1.000000e+00 : f32
    %18 = vector.broadcast %cst_11 : f32 to vector<16x32xf32>
    %19 = arith.addf %18, %17 : vector<16x32xf32>
    %20 = tpu.reciprocal %19 {approx = true} : vector<16x32xf32> -> vector<16x32xf32>
    %21 = arith.mulf %19, %20 : vector<16x32xf32>
    %cst_12 = arith.constant 2.000000e+00 : f32
    %22 = vector.broadcast %cst_12 : f32 to vector<16x32xf32>
    %23 = arith.subf %22, %21 : vector<16x32xf32>
    %24 = arith.mulf %20, %23 : vector<16x32xf32>
    %cst_13 = arith.constant 1.06140542 : f32
    %25 = vector.broadcast %cst_13 : f32 to vector<16x32xf32>
    %26 = arith.mulf %25, %24 : vector<16x32xf32>
    %cst_14 = arith.constant -1.45315206 : f32
    %27 = vector.broadcast %cst_14 : f32 to vector<16x32xf32>
    %28 = arith.addf %26, %27 : vector<16x32xf32>
    %29 = arith.mulf %28, %24 : vector<16x32xf32>
    %cst_15 = arith.constant 1.42141378 : f32
    %30 = vector.broadcast %cst_15 : f32 to vector<16x32xf32>
    %31 = arith.addf %29, %30 : vector<16x32xf32>
    %32 = arith.mulf %31, %24 : vector<16x32xf32>
    %cst_16 = arith.constant -0.284496725 : f32
    %33 = vector.broadcast %cst_16 : f32 to vector<16x32xf32>
    %34 = arith.addf %32, %33 : vector<16x32xf32>
    %35 = arith.mulf %34, %24 : vector<16x32xf32>
    %cst_17 = arith.constant 0.254829586 : f32
    %36 = vector.broadcast %cst_17 : f32 to vector<16x32xf32>
    %37 = arith.addf %35, %36 : vector<16x32xf32>
    %38 = arith.mulf %37, %24 : vector<16x32xf32>
    %cst_18 = arith.constant 0.000000e+00 : f32
    %39 = vector.broadcast %cst_18 : f32 to vector<16x32xf32>
    %40 = arith.subf %39, %15 : vector<16x32xf32>
    %41 = arith.mulf %40, %15 : vector<16x32xf32>
    %42 = math.exp %41 : vector<16x32xf32>
    %43 = arith.mulf %38, %42 : vector<16x32xf32>
    %cst_19 = arith.constant 1.000000e+00 : f32
    %44 = vector.broadcast %cst_19 : f32 to vector<16x32xf32>
    %45 = arith.subf %44, %43 : vector<16x32xf32>
    %46 = arith.mulf %14, %45 : vector<16x32xf32>
    %cst_20 = arith.constant 1.000000e+00 : f32
    %47 = vector.broadcast %cst_20 : f32 to vector<16x32xf32>
    %48 = arith.addf %47, %46 : vector<16x32xf32>
    %49 = arith.mulf %7, %48 : vector<16x32xf32>
    %c0_21 = arith.constant 0 : index
    %c0_22 = arith.constant 0 : index
    %50 = vector.load %arg4[%c0_21, %c0_22] : memref<16x32xf32, #tpu.memory_space<vmem>>, vector<16x32xf32>
    tpu.vector_store %arg4[%c0_21, %c0_22], %49 {strides = array<i32>} : memref<16x32xf32, #tpu.memory_space<vmem>>, vector<16x32xf32>,
    return
  }
  func.func @transform_0(%arg0: i32) -> (i32, i32) {
    %c0_i32 = arith.constant 0 : i32
    %c0_i32_0 = arith.constant 0 : i32
    %c0_i32_1 = arith.constant 0 : i32
    return %c0_i32, %c0_i32_0 : i32, i32
  }
  func.func @transform_1(%arg0: i32) -> (i32, i32) {
    %c0_i32 = arith.constant 0 : i32
    %c0_i32_0 = arith.constant 0 : i32
    %c0_i32_1 = arith.constant 0 : i32
    return %c0_i32, %c0_i32_0 : i32, i32
  }
  func.func @transform_2(%arg0: i32) -> (i32, i32) {
    %c0_i32 = arith.constant 0 : i32
    %c0_i32_0 = arith.constant 0 : i32
    %c0_i32_1 = arith.constant 0 : i32
    return %c0_i32, %c0_i32_0 : i32, i32
  }
  func.func @transform_3(%arg0: i32) -> (i32, i32) {
    %c0_i32 = arith.constant 0 : i32
    %c0_i32_0 = arith.constant 0 : i32
    %c0_i32_1 = arith.constant 0 : i32
    return %c0_i32, %c0_i32_0 : i32, i32
  }
}

</mosaic_0001>

<llo_original>
// kernel: tpu_custom_call.1
$region0: #{tpu_custom_call.1}
  #allocation0 [shape = 'u32[]', space=smem, size = 0x4, offset = 0x4, fixed_abs, tag = 'smem constant byte address 0x4 - core index']
  #allocation1 [shape = 'u32[72,128]{1,0:T(1,128)}', space=vmem, size = 0x9000, scoped, tag = 'internal scratch']
  %s0 = inlined_call_operand.vmem [shape: f32[16,128], index: 0, kind: input, shape index: {}]
  %s1 = inlined_call_operand.vmem [shape: f32[128,32], index: 1, kind: input, shape index: {}]
  %s2 = inlined_call_operand.vmem [shape: f32[1,32], index: 2, kind: input, shape index: {}]
  %s3 = inlined_call_operand.hbm [shape: f32[16,32], index: 3, kind: output, shape index: {}]
  %s4 = sld [smem:[#allocation0]]
  $region22: #{tpu_custom_call.1} parent=0
    _
  %s6 = ssub.s32 1, %s4
  %s7 = scalar_select 0, %s6, %s4
  $region1: #{tpu_custom_call.1} parent=0
    #allocation2 [shape = 'u8[8192]{0}', space=vmem, size = 0x2000, scoped, tag = 'output window, operand 0, single buffered']
    #allocation3 [shape = 's32[1]{0}', space=sflag, size = 0x4, scoped, tag = 'scoped memory for tpu_custom_call.1']
    %8 = vsyncpa [#allocation3], 0
    // Predicated region
    $region2: #{tpu_custom_call.1} parent=1 // pred_check
      _
    $region3: #{tpu_custom_call.1} parent=1 // pred_check_branch
      %10 = sbr.rel (0) target = $region5
    $region4: #{tpu_custom_call.1} parent=1 // pred_region
      _
    $region5: #{tpu_custom_call.1} parent=1 // pred_fallthru
      _
    // Predicated region
    $region6: #{tpu_custom_call.1} parent=1 // pred_check
      _
    $region7: #{tpu_custom_call.1} parent=1 // pred_check_branch
      %12 = sbr.rel (0) target = $region9
    $region8: #{tpu_custom_call.1} parent=1 // pred_region
      _
    $region9: #{tpu_custom_call.1} parent=1 // pred_fallthru
      _
    // Predicated region
    $region10: #{tpu_custom_call.1} parent=1 // pred_check
      _
    $region11: #{tpu_custom_call.1} parent=1 // pred_check_branch
      %14 = sbr.rel (0) target = $region13
    $region12: #{tpu_custom_call.1} parent=1 // pred_region
      _
    $region13: #{tpu_custom_call.1} parent=1 // pred_fallthru
      _
    %v15 = vld [vmem:[%s0] sm:$0xff]
    %v16 = vld [vmem:[%s0 + $0x8] sm:$0xff]
    %v17 = vld [vmem:[%s1] sm:$0xff]
    %v18 = vld [vmem:[%s1 + $0x8] sm:$0xff]
    %v19 = vld [vmem:[%s1 + $0x10] sm:$0xff]
    %v20 = vld [vmem:[%s1 + $0x18] sm:$0xff]
    %v21 = vld [vmem:[%s1 + $0x20] sm:$0xff]
    %v22 = vld [vmem:[%s1 + $0x28] sm:$0xff]
    %v23 = vld [vmem:[%s1 + $0x30] sm:$0xff]
    %v24 = vld [vmem:[%s1 + $0x38] sm:$0xff]
    %v25 = vld [vmem:[%s1 + $0x40] sm:$0xff]
    %v26 = vld [vmem:[%s1 + $0x48] sm:$0xff]
    %v27 = vld [vmem:[%s1 + $0x50] sm:$0xff]
    %v28 = vld [vmem:[%s1 + $0x58] sm:$0xff]
    %v29 = vld [vmem:[%s1 + $0x60] sm:$0xff]
    %v30 = vld [vmem:[%s1 + $0x68] sm:$0xff]
    %v31 = vld [vmem:[%s1 + $0x70] sm:$0xff]
    %v32 = vld [vmem:[%s1 + $0x78] sm:$0xff]
    %v33 = vld [vmem:[%s2] sm:$0x1]
    %v35 = vperm.slane %v33, 0
    %37 = vmatpush.msra.mxu0 %v32
    %38 = vmatpush.msra.mxu0 %v31
    %39 = vmatpush.msra.mxu0 %v30
    %40 = vmatpush.msra.mxu0 %v29
    %41 = vmatpush.msra.mxu0 %v28
    %42 = vmatpush.msra.mxu0 %v27
    %43 = vmatpush.msra.mxu0 %v26
    %44 = vmatpush.msra.mxu0 %v25
    %45 = vmatpush.msra.mxu0 %v24
    %46 = vmatpush.msra.mxu0 %v23
    %47 = vmatpush.msra.mxu0 %v22
    %48 = vmatpush.msra.mxu0 %v21
    %49 = vmatpush.msra.mxu0 %v20
    %50 = vmatpush.msra.mxu0 %v19
    %51 = vmatpush.msra.mxu0 %v18
    %52 = vmatpush.msra.mxu0 %v17
    %53 = vmatmul.f32.gmra.mxu0 %v15
    %v54 = vpop.f32.mrf.mxu0
    %v55 = vadd.f32 %v35, %v54
    %56 = vmatmul.f32.gmra.mxu0 %v16
    %v57 = vpop.f32.mrf.mxu0
    %v58 = vadd.f32 %v35, %v57
    %59 = vdwg.mxu0
    %v60 = vmul.f32 %v55, 0.5
    %v61 = vmul.f32 %v58, 0.5
    %v62 = vmul.f32 %v55, 0.70710677
    %v63 = vmul.f32 %v58, 0.70710677
    %vm64 = vcmp.ge.f32.partialorder %v62, 0.0
    %vm65 = vcmp.ge.f32.partialorder %v63, 0.0
    %v66 = vsel %vm64, 1.0, -1.0
    %v67 = vsel %vm65, 1.0, -1.0
    %v68 = vand.u32 2147483647, %v62
    %v69 = vand.u32 2147483647, %v63
    %v70 = vmul.f32 %v68, 0.3275911
    %v71 = vmul.f32 %v69, 0.3275911
    %v72 = vadd.f32 %v70, 1.0
    %v73 = vadd.f32 %v71, 1.0
    %v74 = vrcp.pop %v72
    %v75 = vrcp.pop %v73
    %v76 = vmul.f32 %v72, %v74
    %v77 = vmul.f32 %v73, %v75
    %v78 = vsub.f32 2.0, %v76
    %v79 = vsub.f32 2.0, %v77
    %v80 = vmul.f32 %v74, %v78
    %v81 = vmul.f32 %v75, %v79
    %v82 = vmul.f32 %v80, 1.0614054
    %v83 = vmul.f32 %v81, 1.0614054
    %v84 = vadd.f32 %v82, -1.4531521
    %v85 = vadd.f32 %v83, -1.4531521
    %v86 = vmul.f32 %v84, %v80
    %v87 = vmul.f32 %v85, %v81
    %v88 = vadd.f32 %v86, 1.4214138
    %v89 = vadd.f32 %v87, 1.4214138
    %v90 = vmul.f32 %v88, %v80
    %v91 = vmul.f32 %v89, %v81
    %v92 = vadd.f32 %v90, -0.28449672
    %v93 = vadd.f32 %v91, -0.28449672
    %v94 = vmul.f32 %v92, %v80
    %v95 = vmul.f32 %v93, %v81
    %v96 = vadd.f32 %v94, 0.2548296
    %v97 = vadd.f32 %v95, 0.2548296
    %v98 = vmul.f32 %v96, %v80
    %v99 = vmul.f32 %v97, %v81
    %v100 = vsub.f32 0.0, %v68
    %v101 = vsub.f32 0.0, %v69
    %v102 = vmul.f32 %v100, %v68
    %v103 = vmul.f32 %v101, %v69
    %v104 = vmul.f32 %v102, 1.442695
    %v105 = vpow.pop %v104
    %v106 = vmul.f32 %v103, 1.442695
    %v107 = vpow.pop %v106
    %v108 = vmul.f32 %v98, %v105
    %v109 = vmul.f32 %v99, %v107
    %v110 = vsub.f32 1.0, %v108
    %v111 = vsub.f32 1.0, %v109
    %v112 = vmul.f32 %v66, %v110
    %v113 = vmul.f32 %v67, %v111
    %v114 = vadd.f32 %v112, 1.0
    %v115 = vadd.f32 %v113, 1.0
    %v116 = vmul.f32 %v60, %v114
    %v117 = vmul.f32 %v61, %v115
    %vm118 = vcmask 261120
    %119 = vst.msk [vmem:[#allocation2] sm:$0xff] %vm118, %v116
    %120 = vst.msk [vmem:[#allocation2 + $0x8] sm:$0xff] %vm118, %v117
    // Predicated region
    $region14: #{tpu_custom_call.1} parent=1 // pred_check
      _
    $region15: #{tpu_custom_call.1} parent=1 // pred_check_branch
      %122 = sbr.rel (0) target = $region17
    $region16: #{tpu_custom_call.1} parent=1 // pred_region
      %124 = vsyncadd [#allocation3], 0
      %s125 = sshll.u32 [#allocation2], 4
      %s126 = int_to_ptr.vmem [resolvable:$true] %s125
      %s127 = sshll.u32 %s3, 4
      %s128 = int_to_ptr.hbm [resolvable:$true] %s127
      %133 = dma.vmem_to_hbm [thread:$0]  %s126, 256, %s128, [#allocation3], 128, 128, 8
    $region17: #{tpu_custom_call.1} parent=1 // pred_fallthru
      _
    // Predicated region
    $region18: #{tpu_custom_call.1} parent=1 // pred_check
      _
    $region19: #{tpu_custom_call.1} parent=1 // pred_check_branch
      %135 = sbr.rel (0) target = $region21
    $region20: #{tpu_custom_call.1} parent=1 // pred_region
      %137 = dma.done [#allocation3], 256
    $region21: #{tpu_custom_call.1} parent=1 // pred_fallthru
      _
    %138 = vsyncpa [#allocation3], 1

</llo_original>
